<compile_context>
chip_gen: v7x
topology: tpu7x:2x2x1
jax: 0.10.0
libtpu: 0.0.40
codegen_flags: <defaults>
</compile_context>

<pallas_src>
import jax
import jax.numpy as jnp
from jax.experimental import pallas as pl
from jax.experimental.pallas import tpu as pltpu


def _round_up(n, m):
    return ((n + m - 1) // m) * m


def _qnet_kernel(x_ref, w1_ref, b1_ref, w2_ref, b2_ref, o_ref):
    # Fused linear1 -> ReLU -> linear2, everything resident in VMEM.
    # Operands feed the MXU in their native dtype (bf16 runs at full MXU rate);
    # accumulation is f32 via preferred_element_type; bias adds made f32 explicitly.
    x = x_ref[...]
    h = jnp.dot(x, w1_ref[...], preferred_element_type=jnp.float32)
    h = jnp.maximum(h + b1_ref[...].astype(jnp.float32), 0.0)        # ReLU
    h = h.astype(w2_ref.dtype)                                       # keep MXU operands narrow
    y = jnp.dot(h, w2_ref[...], preferred_element_type=jnp.float32)
    y = y + b2_ref[...].astype(jnp.float32)
    o_ref[...] = y.astype(o_ref.dtype)


def linear_qnet_forward(x, w1, b1, w2, b2, *, tb=1024):
    """x: (B, input_size); w1: (input_size, hidden); b1: (1, hidden);
    w2: (hidden, output); b2: (1, output).  Returns (B, output) in x.dtype."""
    B, in_size = x.shape
    in_w1, hidden = w1.shape
    hid_w2, out_size = w2.shape
    assert in_w1 == in_size and hid_w2 == hidden
    assert b1.shape == (1, hidden) and b2.shape == (1, out_size)

    # --- batch tiling: features stay at true width, only the batch remainder
    # --- may need padding -----------------------------------------------------
    if B <= tb:
        tb_eff = B                      # full-dim block: legal at any alignment
        b_p = B
        x_in = x                        # no copy at all
    else:
        tb_eff = _round_up(min(tb, B), 8)   # sublane-aligned tile
        b_p = _round_up(B, tb_eff)
        if b_p != B:
            # pad ONLY the batch remainder (at most tb_eff-1 garbage rows,
            # sliced away below); zero-fill keeps the kernel math well-defined.
            x_in = jnp.zeros((b_p, in_size), x.dtype).at[:B].set(x)
        else:
            x_in = x

    grid = (b_p // tb_eff,)

    # Truthful scheduling hint: real FLOPs / real bytes (unpadded dims).
    itemsize = jnp.dtype(x.dtype).itemsize
    bytes_accessed = (
        x_in.size * x_in.dtype.itemsize
        + sum(a.size * a.dtype.itemsize for a in (w1, b1, w2, b2))
        + b_p * out_size * itemsize
    )
    cost = pl.CostEstimate(
        flops=2 * B * (in_size * hidden + hidden * out_size),
        transcendentals=0,
        bytes_accessed=bytes_accessed,
    )

    out = pl.pallas_call(
        _qnet_kernel,
        out_shape=jax.ShapeDtypeStruct((b_p, out_size), x.dtype),
        grid_spec=pltpu.PrefetchScalarGridSpec(
            num_scalar_prefetch=0,
            grid=grid,
            in_specs=[
                # activations: one batch tile per grid step (pipelined DMA),
                # feature dim at its true width (== full array dim).
                pl.BlockSpec((tb_eff, in_size), lambda i: (i, 0)),
                # weights / biases: constant index_map -> resident in VMEM,
                # fetched once, no per-call padding copies.
                pl.BlockSpec((in_size, hidden), lambda i: (0, 0)),
                pl.BlockSpec((1, hidden), lambda i: (0, 0)),
                pl.BlockSpec((hidden, out_size), lambda i: (0, 0)),
                pl.BlockSpec((1, out_size), lambda i: (0, 0)),
            ],
            # byte-exact output: out_size-wide masked stores are cheap and beat
            # a 128-wide (32x inflated) writeback + extra slice copy.
            out_specs=pl.BlockSpec((tb_eff, out_size), lambda i: (i, 0)),
        ),
        compiler_params=pltpu.CompilerParams(
            dimension_semantics=("parallel",),
        ),
        cost_estimate=cost,
    )(x_in, w1, b1, w2, b2)

    return out if b_p == B else out[:B]


def init_params(key, input_size, hidden_size, output_size, dtype=jnp.float32):
    """Matches nn.Linear's default U(-1/sqrt(fan_in), 1/sqrt(fan_in)) init.
    Create once in the dtype you will run with (bf16 recommended on TPU) --
    there is no per-call preprocessing of the parameters."""
    k1, k2, k3, k4 = jax.random.split(key, 4)
    bound1 = 1.0 / (input_size ** 0.5)
    bound2 = 1.0 / (hidden_size ** 0.5)
    w1 = jax.random.uniform(k1, (input_size, hidden_size), dtype, -bound1, bound1)
    b1 = jax.random.uniform(k2, (1, hidden_size), dtype, -bound1, bound1)
    w2 = jax.random.uniform(k3, (hidden_size, output_size), dtype, -bound2, bound2)
    b2 = jax.random.uniform(k4, (1, output_size), dtype, -bound2, bound2)
    return w1, b1, w2, b2


# TODO(synk): Linear_QNet.save() is host-side file I/O (torch.save) and has no
# kernel equivalent; it is intentionally out of scope for the forward pass.


if __name__ == "__main__":
    key = jax.random.PRNGKey(0)
    kx, kp = jax.random.split(key)

    batch = 2
    input_size, hidden_size, output_size = 16, 32, 4

    # ---------------- f32 path (tight reference check) ----------------------
    x = jax.random.normal(kx, (batch, input_size), dtype=jnp.float32)
    w1, b1, w2, b2 = init_params(kp, input_size, hidden_size, output_size)

    out = linear_qnet_forward(x, w1, b1, w2, b2)
    out = jax.block_until_ready(out)

    ref = jnp.maximum(x @ w1 + b1, 0.0) @ w2 + b2
    assert out.shape == (batch, output_size)
    assert jnp.allclose(out, ref, atol=1e-5, rtol=1e-5), (
        f"f32 max abs err = {jnp.max(jnp.abs(out - ref))}"
    )

    # ---------------- bf16 path (halved HBM streams, native MXU rate) -------
    xb = x.astype(jnp.bfloat16)
    w1b, b1b, w2b, b2b = (a.astype(jnp.bfloat16) for a in (w1, b1, w2, b2))
    out_bf16 = jax.block_until_ready(linear_qnet_forward(xb, w1b, b1b, w2b, b2b))
    assert out_bf16.shape == (batch, output_size)
    assert jnp.allclose(out_bf16.astype(jnp.float32), ref, atol=5e-2, rtol=5e-2), (
        f"bf16 max abs err = {jnp.max(jnp.abs(out_bf16.astype(jnp.float32) - ref))}"
    )

    # ---------------- multi-tile path with a batch remainder ----------------
    big_b = 1000
    xl = jax.random.normal(kx, (big_b, input_size), dtype=jnp.float32)
    out_l = jax.block_until_ready(linear_qnet_forward(xl, w1, b1, w2, b2, tb=256))
    ref_l = jnp.maximum(xl @ w1 + b1, 0.0) @ w2 + b2
    assert out_l.shape == (big_b, output_size)
    assert jnp.allclose(out_l, ref_l, atol=1e-5, rtol=1e-5), (
        f"tiled max abs err = {jnp.max(jnp.abs(out_l - ref_l))}"
    )

    print("KERNEL_OK")
</pallas_src>

<mosaic_0001>
module attributes {stable_mosaic.version = 11 : i64} {
  func.func @_qnet_kernel(%arg0: i32, %arg1: memref<2x16xf32, #tpu.memory_space<vmem>>, %arg2: memref<16x32xf32, #tpu.memory_space<vmem>>, %arg3: memref<1x32xf32, #tpu.memory_space<vmem>>, %arg4: memref<32x4xf32, #tpu.memory_space<vmem>>, %arg5: memref<1x4xf32, #tpu.memory_space<vmem>>, %arg6: memref<2x4xf32, #tpu.memory_space<vmem>>) attributes {dimension_semantics = [#tpu.dimension_semantics<parallel>], iteration_bounds = array<i64: 1>, scalar_prefetch = 0 : i64, scratch_operands = 0 : i64, tpu.core_type = #tpu.core_type<tc>, window_params = [{transform_indices = @transform_0, window_bounds = array<i64: 2, 16>}, {pipeline_mode = #tpu.pipeline_mode<synchronous>, transform_indices = @transform_1, window_bounds = array<i64: 16, 32>}, {pipeline_mode = #tpu.pipeline_mode<synchronous>, transform_indices = @transform_2, window_bounds = array<i64: 1, 32>}, {pipeline_mode = #tpu.pipeline_mode<synchronous>, transform_indices = @transform_3, window_bounds = array<i64: 32, 4>}, {pipeline_mode = #tpu.pipeline_mode<synchronous>, transform_indices = @transform_4, window_bounds = array<i64: 1, 4>}, {transform_indices = @transform_5, window_bounds = array<i64: 2, 4>}]} {
    %c0 = arith.constant 0 : index
    %c0_0 = arith.constant 0 : index
    %0 = vector.load %arg1[%c0, %c0_0] : memref<2x16xf32, #tpu.memory_space<vmem>>, vector<2x16xf32>
    %c0_1 = arith.constant 0 : index
    %c0_2 = arith.constant 0 : index
    %1 = vector.load %arg2[%c0_1, %c0_2] : memref<16x32xf32, #tpu.memory_space<vmem>>, vector<16x32xf32>
    %cst = arith.constant dense<0.000000e+00> : vector<2x32xf32>
    %2 = tpu.matmul %0, %1, %cst {dimension_numbers = #tpu.dot_dimension_numbers<[1], [0], [0], [1], [0, 0, 1, 1], [], []>} : vector<2x16xf32>, vector<16x32xf32>, vector<2x32xf32> -> vector<2x32xf32>
    %c0_3 = arith.constant 0 : index
    %c0_4 = arith.constant 0 : index
    %3 = vector.load %arg3[%c0_3, %c0_4] : memref<1x32xf32, #tpu.memory_space<vmem>>, vector<1x32xf32>
    %4 = vector.broadcast %3 : vector<1x32xf32> to vector<2x32xf32>
    %5 = arith.addf %2, %4 : vector<2x32xf32>
    %cst_5 = arith.constant 0.000000e+00 : f32
    %6 = vector.broadcast %cst_5 : f32 to vector<2x32xf32>
    %7 = arith.maximumf %5, %6 : vector<2x32xf32>
    %c0_6 = arith.constant 0 : index
    %c0_7 = arith.constant 0 : index
    %8 = vector.load %arg4[%c0_6, %c0_7] : memref<32x4xf32, #tpu.memory_space<vmem>>, vector<32x4xf32>
    %cst_8 = arith.constant dense<0.000000e+00> : vector<2x4xf32>
    %9 = tpu.matmul %7, %8, %cst_8 {dimension_numbers = #tpu.dot_dimension_numbers<[1], [0], [0], [1], [0, 0, 1, 1], [], []>} : vector<2x32xf32>, vector<32x4xf32>, vector<2x4xf32> -> vector<2x4xf32>
    %c0_9 = arith.constant 0 : index
    %c0_10 = arith.constant 0 : index
    %10 = vector.load %arg5[%c0_9, %c0_10] : memref<1x4xf32, #tpu.memory_space<vmem>>, vector<1x4xf32>
    %11 = vector.broadcast %10 : vector<1x4xf32> to vector<2x4xf32>
    %12 = arith.addf %9, %11 : vector<2x4xf32>
    %c0_11 = arith.constant 0 : index
    %c0_12 = arith.constant 0 : index
    %13 = vector.load %arg6[%c0_11, %c0_12] : memref<2x4xf32, #tpu.memory_space<vmem>>, vector<2x4xf32>
    tpu.vector_store %arg6[%c0_11, %c0_12], %12 {strides = array<i32>} : memref<2x4xf32, #tpu.memory_space<vmem>>, vector<2x4xf32>,
    return
  }
  func.func @transform_0(%arg0: i32) -> (i32, i32) {
    %c0_i32 = arith.constant 0 : i32
    %c0_i32_0 = arith.constant 0 : i32
    return %arg0, %c0_i32 : i32, i32
  }
  func.func @transform_1(%arg0: i32) -> (i32, i32) {
    %c0_i32 = arith.constant 0 : i32
    %c0_i32_0 = arith.constant 0 : i32
    %c0_i32_1 = arith.constant 0 : i32
    return %c0_i32, %c0_i32_0 : i32, i32
  }
  func.func @transform_2(%arg0: i32) -> (i32, i32) {
    %c0_i32 = arith.constant 0 : i32
    %c0_i32_0 = arith.constant 0 : i32
    %c0_i32_1 = arith.constant 0 : i32
    return %c0_i32, %c0_i32_0 : i32, i32
  }
  func.func @transform_3(%arg0: i32) -> (i32, i32) {
    %c0_i32 = arith.constant 0 : i32
    %c0_i32_0 = arith.constant 0 : i32
    %c0_i32_1 = arith.constant 0 : i32
    return %c0_i32, %c0_i32_0 : i32, i32
  }
  func.func @transform_4(%arg0: i32) -> (i32, i32) {
    %c0_i32 = arith.constant 0 : i32
    %c0_i32_0 = arith.constant 0 : i32
    %c0_i32_1 = arith.constant 0 : i32
    return %c0_i32, %c0_i32_0 : i32, i32
  }
  func.func @transform_5(%arg0: i32) -> (i32, i32) {
    %c0_i32 = arith.constant 0 : i32
    %c0_i32_0 = arith.constant 0 : i32
    return %arg0, %c0_i32 : i32, i32
  }
}

</mosaic_0001>

<llo_original>
// kernel: tpu_custom_call.1
$region0: #{tpu_custom_call.1}
  #allocation0 [shape = 'u32[]', space=smem, size = 0x4, offset = 0x4, fixed_abs, tag = 'smem constant byte address 0x4 - core index']
  #allocation1 [shape = 'u32[144,128]{1,0:T(1,128)}', space=vmem, size = 0x12000, scoped, tag = 'internal scratch']
  %s0 = inlined_call_operand.vmem [shape: f32[2,16], index: 0, kind: input, shape index: {}]
  %s1 = inlined_call_operand.vmem [shape: f32[16,32], index: 1, kind: input, shape index: {}]
  %s2 = inlined_call_operand.vmem [shape: f32[1,32], index: 2, kind: input, shape index: {}]
  %s3 = inlined_call_operand.vmem [shape: f32[32,4], index: 3, kind: input, shape index: {}]
  %s4 = inlined_call_operand.vmem [shape: f32[1,4], index: 4, kind: input, shape index: {}]
  %s5 = inlined_call_operand.hbm [shape: f32[2,4], index: 5, kind: output, shape index: {}]
  %s6 = sld [smem:[#allocation0]]
  $region30: #{tpu_custom_call.1} parent=0
    _
  %s8 = ssub.s32 1, %s6
  %s9 = scalar_select 0, %s8, %s6
  $region1: #{tpu_custom_call.1} parent=0
    #allocation2 [shape = 'u8[1024]{0}', space=vmem, size = 0x400, scoped, tag = 'output window, operand 0, single buffered']
    #allocation3 [shape = 's32[1]{0}', space=sflag, size = 0x4, scoped, tag = 'scoped memory for tpu_custom_call.1']
    %10 = vsyncpa [#allocation3], 0
    // Predicated region
    $region2: #{tpu_custom_call.1} parent=1 // pred_check
      _
    $region3: #{tpu_custom_call.1} parent=1 // pred_check_branch
      %12 = sbr.rel (0) target = $region5
    $region4: #{tpu_custom_call.1} parent=1 // pred_region
      _
    $region5: #{tpu_custom_call.1} parent=1 // pred_fallthru
      _
    // Predicated region
    $region6: #{tpu_custom_call.1} parent=1 // pred_check
      _
    $region7: #{tpu_custom_call.1} parent=1 // pred_check_branch
      %14 = sbr.rel (0) target = $region9
    $region8: #{tpu_custom_call.1} parent=1 // pred_region
      _
    $region9: #{tpu_custom_call.1} parent=1 // pred_fallthru
      _
    // Predicated region
    $region10: #{tpu_custom_call.1} parent=1 // pred_check
      _
    $region11: #{tpu_custom_call.1} parent=1 // pred_check_branch
      %16 = sbr.rel (0) target = $region13
    $region12: #{tpu_custom_call.1} parent=1 // pred_region
      _
    $region13: #{tpu_custom_call.1} parent=1 // pred_fallthru
      _
    // Predicated region
    $region14: #{tpu_custom_call.1} parent=1 // pred_check
      _
    $region15: #{tpu_custom_call.1} parent=1 // pred_check_branch
      %18 = sbr.rel (0) target = $region17
    $region16: #{tpu_custom_call.1} parent=1 // pred_region
      _
    $region17: #{tpu_custom_call.1} parent=1 // pred_fallthru
      _
    // Predicated region
    $region18: #{tpu_custom_call.1} parent=1 // pred_check
      _
    $region19: #{tpu_custom_call.1} parent=1 // pred_check_branch
      %20 = sbr.rel (0) target = $region21
    $region20: #{tpu_custom_call.1} parent=1 // pred_region
      _
    $region21: #{tpu_custom_call.1} parent=1 // pred_fallthru
      _
    %v21 = vld [vmem:[%s0] sm:$0x3]
    %v22 = vld [vmem:[%s1] sm:$0xff]
    %v23 = vld [vmem:[%s1 + $0x8] sm:$0xff]
    %v24 = vld [vmem:[%s2] sm:$0x1]
    %v26 = vlaneseq
    %v27 = vshrl.u32 %v26, 7
    %v28 = vsub.s32 0, %v27
    %v29 = vrot.slane %v24, %v28
    %vm31 = vcmask 130048
    %v33 = vsel %vm31, %v21, 0
    %35 = vmatprep.subr.mxu0 0.0
    %36 = vmatpush1.msra.mxu0 %v22
    %37 = vmatprep.subr.mxu0 0.0
    %38 = vmatpush1.msra.mxu0 %v23
    %39 = vmatprep.subr.mxu0 0.0
    %40 = vmatpush1.msra.mxu0 0.0
    %41 = vmatprep.subr.mxu0 0.0
    %42 = vmatpush1.msra.mxu0 0.0
    %43 = vmatprep.subr.mxu0 0.0
    %44 = vmatpush1.msra.mxu0 0.0
    %45 = vmatprep.subr.mxu0 0.0
    %46 = vmatpush1.msra.mxu0 0.0
    %47 = vmatprep.subr.mxu0 0.0
    %48 = vmatpush1.msra.mxu0 0.0
    %49 = vmatprep.subr.mxu0 0.0
    %50 = vmatpush1.msra.mxu0 0.0
    %51 = vmatprep.subr.mxu0 0.0
    %52 = vmatpush1.msra.mxu0 0.0
    %53 = vmatprep.subr.mxu0 0.0
    %54 = vmatpush1.msra.mxu0 0.0
    %55 = vmatprep.subr.mxu0 0.0
    %56 = vmatpush1.msra.mxu0 0.0
    %57 = vmatprep.subr.mxu0 0.0
    %58 = vmatpush1.msra.mxu0 0.0
    %59 = vmatprep.subr.mxu0 0.0
    %60 = vmatpush1.msra.mxu0 0.0
    %61 = vmatprep.subr.mxu0 0.0
    %62 = vmatpush1.msra.mxu0 0.0
    %63 = vmatprep.subr.mxu0 0.0
    %64 = vmatpush1.msra.mxu0 0.0
    %65 = vmatprep.subr.mxu0 0.0
    %66 = vmatpush1.msra.mxu0 0.0
    %67 = vmatprep.subr.mxu0 0.0
    %68 = vmatpush1.msra.mxu0 0.0
    %69 = vmatprep.subr.mxu0 0.0
    %70 = vmatpush1.msra.mxu0 0.0
    %71 = vmatprep.subr.mxu0 0.0
    %72 = vmatpush1.msra.mxu0 0.0
    %73 = vmatprep.subr.mxu0 0.0
    %74 = vmatpush1.msra.mxu0 0.0
    %75 = vmatprep.subr.mxu0 0.0
    %76 = vmatpush1.msra.mxu0 0.0
    %77 = vmatprep.subr.mxu0 0.0
    %78 = vmatpush1.msra.mxu0 0.0
    %79 = vmatprep.subr.mxu0 0.0
    %80 = vmatpush1.msra.mxu0 0.0
    %81 = vmatprep.subr.mxu0 0.0
    %82 = vmatpush1.msra.mxu0 0.0
    %83 = vmatprep.subr.mxu0 0.0
    %84 = vmatpush1.msra.mxu0 0.0
    %85 = vmatprep.subr.mxu0 0.0
    %86 = vmatpush1.msra.mxu0 0.0
    %87 = vmatprep.subr.mxu0 0.0
    %88 = vmatpush1.msra.mxu0 0.0
    %89 = vmatprep.subr.mxu0 0.0
    %90 = vmatpush1.msra.mxu0 0.0
    %91 = vmatprep.subr.mxu0 0.0
    %92 = vmatpush1.msra.mxu0 0.0
    %93 = vmatprep.subr.mxu0 0.0
    %94 = vmatpush1.msra.mxu0 0.0
    %95 = vmatprep.subr.mxu0 0.0
    %96 = vmatpush1.msra.mxu0 0.0
    %97 = vmatprep.subr.mxu0 0.0
    %98 = vmatpush1.msra.mxu0 0.0
    %99 = vmatprep.mubr.f32.mxu0 0.0
    %100 = vmatmul.mubr.f32.gmra.mrb[0].mxu0 %v33
    %v101 = vpop.f32.mrb[0].mxu0
    %v102 = vadd.f32 %v29, %v101
    %v103 = vpop.f32.mrb[0].mxu0
    %104 = vdwg.mxu0
    %v105 = vmax.f32 %v102, 0.0
    %v106 = vld [vmem:[%s3] sm:$0xff]
    %v107 = vld [vmem:[%s3 + $0x8] sm:$0xff]
    %v108 = vld [vmem:[%s3 + $0x10] sm:$0xff]
    %v109 = vld [vmem:[%s3 + $0x18] sm:$0xff]
    %v110 = vld [vmem:[%s4] sm:$0x1]
    %v112 = vlaneseq
    %v113 = vshrl.u32 %v112, 7
    %v114 = vsub.s32 0, %v113
    %v115 = vrot.slane %v110, %v114
    %vm117 = vcmask 261120
    %v119 = vsel %vm117, %v105, 0
    %121 = vmatprep.subr.mxu0 0.0
    %122 = vmatpush1.msra.mxu0 %v106
    %123 = vmatprep.subr.mxu0 0.0
    %124 = vmatpush1.msra.mxu0 %v107
    %125 = vmatprep.subr.mxu0 0.0
    %126 = vmatpush1.msra.mxu0 %v108
    %127 = vmatprep.subr.mxu0 0.0
    %128 = vmatpush1.msra.mxu0 %v109
    %129 = vmatprep.subr.mxu0 0.0
    %130 = vmatpush1.msra.mxu0 0.0
    %131 = vmatprep.subr.mxu0 0.0
    %132 = vmatpush1.msra.mxu0 0.0
    %133 = vmatprep.subr.mxu0 0.0
    %134 = vmatpush1.msra.mxu0 0.0
    %135 = vmatprep.subr.mxu0 0.0
    %136 = vmatpush1.msra.mxu0 0.0
    %137 = vmatprep.subr.mxu0 0.0
    %138 = vmatpush1.msra.mxu0 0.0
    %139 = vmatprep.subr.mxu0 0.0
    %140 = vmatpush1.msra.mxu0 0.0
    %141 = vmatprep.subr.mxu0 0.0
    %142 = vmatpush1.msra.mxu0 0.0
    %143 = vmatprep.subr.mxu0 0.0
    %144 = vmatpush1.msra.mxu0 0.0
    %145 = vmatprep.subr.mxu0 0.0
    %146 = vmatpush1.msra.mxu0 0.0
    %147 = vmatprep.subr.mxu0 0.0
    %148 = vmatpush1.msra.mxu0 0.0
    %149 = vmatprep.subr.mxu0 0.0
    %150 = vmatpush1.msra.mxu0 0.0
    %151 = vmatprep.subr.mxu0 0.0
    %152 = vmatpush1.msra.mxu0 0.0
    %153 = vmatprep.subr.mxu0 0.0
    %154 = vmatpush1.msra.mxu0 0.0
    %155 = vmatprep.subr.mxu0 0.0
    %156 = vmatpush1.msra.mxu0 0.0
    %157 = vmatprep.subr.mxu0 0.0
    %158 = vmatpush1.msra.mxu0 0.0
    %159 = vmatprep.subr.mxu0 0.0
    %160 = vmatpush1.msra.mxu0 0.0
    %161 = vmatprep.subr.mxu0 0.0
    %162 = vmatpush1.msra.mxu0 0.0
    %163 = vmatprep.subr.mxu0 0.0
    %164 = vmatpush1.msra.mxu0 0.0
    %165 = vmatprep.subr.mxu0 0.0
    %166 = vmatpush1.msra.mxu0 0.0
    %167 = vmatprep.subr.mxu0 0.0
    %168 = vmatpush1.msra.mxu0 0.0
    %169 = vmatprep.subr.mxu0 0.0
    %170 = vmatpush1.msra.mxu0 0.0
    %171 = vmatprep.subr.mxu0 0.0
    %172 = vmatpush1.msra.mxu0 0.0
    %173 = vmatprep.subr.mxu0 0.0
    %174 = vmatpush1.msra.mxu0 0.0
    %175 = vmatprep.subr.mxu0 0.0
    %176 = vmatpush1.msra.mxu0 0.0
    %177 = vmatprep.subr.mxu0 0.0
    %178 = vmatpush1.msra.mxu0 0.0
    %179 = vmatprep.subr.mxu0 0.0
    %180 = vmatpush1.msra.mxu0 0.0
    %181 = vmatprep.subr.mxu0 0.0
    %182 = vmatpush1.msra.mxu0 0.0
    %183 = vmatprep.subr.mxu0 0.0
    %184 = vmatpush1.msra.mxu0 0.0
    %185 = vmatprep.mubr.f32.mxu0 0.0
    %186 = vmatmul.mubr.f32.gmra.mrb[0].mxu0 %v119
    %v187 = vpop.f32.mrb[0].mxu0
    %v188 = vadd.f32 %v115, %v187
    %v189 = vpop.f32.mrb[0].mxu0
    %190 = vdwg.mxu0
    %vm191 = vcmask 25600
    %192 = vst.msk [vmem:[#allocation2] sm:$0x3] %vm191, %v188
    // Predicated region
    $region22: #{tpu_custom_call.1} parent=1 // pred_check
      _
    $region23: #{tpu_custom_call.1} parent=1 // pred_check_branch
      %194 = sbr.rel (0) target = $region25
    $region24: #{tpu_custom_call.1} parent=1 // pred_region
      %s196 = ssub.s32 32, 32
      %197 = vsyncadd [#allocation3], %s196
      %s199 = sshll.u32 [#allocation2], 4
      %s200 = int_to_ptr.vmem [resolvable:$true] %s199
      %202 = dma.vmem_to_hbm [thread:$0]  %s200, 32, %s5, [#allocation3]
    $region25: #{tpu_custom_call.1} parent=1 // pred_fallthru
      _
    // Predicated region
    $region26: #{tpu_custom_call.1} parent=1 // pred_check
      _
    $region27: #{tpu_custom_call.1} parent=1 // pred_check_branch
      %204 = sbr.rel (0) target = $region29
    $region28: #{tpu_custom_call.1} parent=1 // pred_region
      %205 = dma.done [#allocation3], 32
    $region29: #{tpu_custom_call.1} parent=1 // pred_fallthru
      _
    %206 = vsyncpa [#allocation3], 1

</llo_original>
